<compile_context>
chip_gen: v7x
topology: tpu7x:2x2x1
jax: 0.10.0
libtpu: 0.0.40
codegen_flags: <defaults>
</compile_context>

<pallas_src>
import jax
import jax.numpy as jnp
from jax.experimental import pallas as pl
from jax.experimental.pallas import tpu as pltpu


def _relu_conv1x1_relu_kernel(x_ref, w_ref, b_ref, o_ref):
    # x_ref: (1, C_in, P_blk) channel-major pixels
    # w_ref: (C_out, C_in), b_ref: (C_out, 1), o_ref: (1, C_out, P_blk)
    x = jnp.maximum(x_ref[0], 0.0)                                  # relu7
    y = jnp.dot(w_ref[...], x, preferred_element_type=jnp.float32)  # 1x1 conv = W @ X
    y = y + b_ref[...]                                              # bias (C_out,1) bcast
    o_ref[0] = jnp.maximum(y, 0.0).astype(o_ref.dtype)              # relu8


def relu_conv1x1_relu(x_nchw, weight, bias):
    """x_nchw: (N, C_in, H, W) f32; weight: (C_out, C_in) f32; bias: (C_out,) f32."""
    N, C_in, H, W = x_nchw.shape
    C_out = weight.shape[0]
    P = H * W

    # NCHW -> (N, C_in, H*W): free reshape, no data movement.
    x3 = x_nchw.reshape(N, C_in, P)
    b2d = bias.reshape(C_out, 1)

    # Pixel-axis blocking: whole thing if small, else a 2-way 128-aligned split
    # (lets v7x use both TensorCores; tail block is masked on writeback).
    if P <= 512:
        block_p = P
    else:
        block_p = 128 * pl.cdiv(pl.cdiv(P, 2), 128)
    n_pblk = pl.cdiv(P, block_p)

    itemsize = 4
    cost = pl.CostEstimate(
        flops=2 * N * P * C_in * C_out,
        transcendentals=0,
        bytes_accessed=itemsize * (N * C_in * P + C_out * C_in + C_out + N * C_out * P),
    )

    out3 = pl.pallas_call(
        _relu_conv1x1_relu_kernel,
        out_shape=jax.ShapeDtypeStruct((N, C_out, P), jnp.float32),
        grid_spec=pl.GridSpec(
            grid=(N, n_pblk),
            in_specs=[
                pl.BlockSpec((1, C_in, block_p), lambda n, p: (n, 0, p)),
                pl.BlockSpec((C_out, C_in), lambda n, p: (0, 0)),
                pl.BlockSpec((C_out, 1), lambda n, p: (0, 0)),
            ],
            out_specs=pl.BlockSpec((1, C_out, block_p), lambda n, p: (n, 0, p)),
        ),
        compiler_params=pltpu.CompilerParams(
            dimension_semantics=("parallel", "parallel")),
        cost_estimate=cost,
    )(x3, weight, b2d)

    # (N, C_out, H*W) -> (N, C_out, H, W): free reshape.
    return out3.reshape(N, C_out, H, W)


def reference(x_nchw, weight, bias):
    x = jnp.maximum(x_nchw, 0.0)
    y = jnp.einsum("nchw,oc->nohw", x, weight) + bias[None, :, None, None]
    return jnp.maximum(y, 0.0)


if __name__ == "__main__":
    key = jax.random.PRNGKey(0)
    kx, kw, kb = jax.random.split(key, 3)

    N, C_in, H, W = 1, 32, 27, 27
    C_out = 128

    x = jax.random.normal(kx, (N, C_in, H, W), dtype=jnp.float32)
    # Deterministic parameter init (Conv2d(32,128,1,1): weight (128,32,1,1) -> (128,32))
    fan_in = C_in  # kernel 1x1
    bound = 1.0 / (fan_in ** 0.5)
    weight = jax.random.uniform(kw, (C_out, C_in), jnp.float32, -bound, bound)
    bias = jax.random.uniform(kb, (C_out,), jnp.float32, -bound, bound)

    out = relu_conv1x1_relu(x, weight, bias)
    out = jax.block_until_ready(out)

    ref = reference(x, weight, bias)
    assert out.shape == (N, C_out, H, W), out.shape
    assert jnp.allclose(out, ref, atol=1e-5, rtol=1e-5), "mismatch vs reference"

    print("KERNEL_OK")
</pallas_src>

<mosaic_0001>
module attributes {stable_mosaic.version = 11 : i64} {
  func.func @_relu_conv1x1_relu_kernel(%arg0: i32, %arg1: i32, %arg2: memref<1x32x384xf32, #tpu.memory_space<vmem>>, %arg3: memref<128x32xf32, #tpu.memory_space<vmem>>, %arg4: memref<128x1xf32, #tpu.memory_space<vmem>>, %arg5: memref<1x128x384xf32, #tpu.memory_space<vmem>>) attributes {dimension_semantics = [#tpu.dimension_semantics<parallel>, #tpu.dimension_semantics<parallel>], iteration_bounds = array<i64: 1, 2>, scalar_prefetch = 0 : i64, scratch_operands = 0 : i64, tpu.core_type = #tpu.core_type<tc>, window_params = [{transform_indices = @transform_0, window_bounds = array<i64: 1, 32, 384>}, {pipeline_mode = #tpu.pipeline_mode<synchronous>, transform_indices = @transform_1, window_bounds = array<i64: 128, 32>}, {pipeline_mode = #tpu.pipeline_mode<synchronous>, transform_indices = @transform_2, window_bounds = array<i64: 128, 1>}, {transform_indices = @transform_3, window_bounds = array<i64: 1, 128, 384>}]} {
    %c0 = arith.constant 0 : index
    %c0_0 = arith.constant 0 : index
    %c0_1 = arith.constant 0 : index
    %0 = vector.load %arg2[%c0, %c0_0, %c0_1] : memref<1x32x384xf32, #tpu.memory_space<vmem>>, vector<1x32x384xf32>
    %1 = vector.shape_cast %0 : vector<1x32x384xf32> to vector<32x384xf32>
    %cst = arith.constant 0.000000e+00 : f32
    %2 = vector.broadcast %cst : f32 to vector<32x384xf32>
    %3 = arith.maximumf %1, %2 : vector<32x384xf32>
    %c0_2 = arith.constant 0 : index
    %c0_3 = arith.constant 0 : index
    %4 = vector.load %arg3[%c0_2, %c0_3] : memref<128x32xf32, #tpu.memory_space<vmem>>, vector<128x32xf32>
    %cst_4 = arith.constant dense<0.000000e+00> : vector<128x384xf32>
    %5 = tpu.matmul %4, %3, %cst_4 {dimension_numbers = #tpu.dot_dimension_numbers<[1], [0], [0], [1], [0, 0, 1, 1], [], []>} : vector<128x32xf32>, vector<32x384xf32>, vector<128x384xf32> -> vector<128x384xf32>
    %c0_5 = arith.constant 0 : index
    %c0_6 = arith.constant 0 : index
    %6 = vector.load %arg4[%c0_5, %c0_6] : memref<128x1xf32, #tpu.memory_space<vmem>>, vector<128x1xf32>
    %7 = vector.broadcast %6 : vector<128x1xf32> to vector<128x384xf32>
    %8 = arith.addf %5, %7 : vector<128x384xf32>
    %cst_7 = arith.constant 0.000000e+00 : f32
    %9 = vector.broadcast %cst_7 : f32 to vector<128x384xf32>
    %10 = arith.maximumf %8, %9 : vector<128x384xf32>
    %c0_8 = arith.constant 0 : index
    %c0_9 = arith.constant 0 : index
    %c0_10 = arith.constant 0 : index
    %11 = vector.load %arg5[%c0_8, %c0_9, %c0_10] : memref<1x128x384xf32, #tpu.memory_space<vmem>>, vector<1x128x384xf32>
    %12 = vector.shape_cast %11 : vector<1x128x384xf32> to vector<128x384xf32>
    %13 = vector.shape_cast %10 : vector<128x384xf32> to vector<1x128x384xf32>
    tpu.vector_store %arg5[%c0_8, %c0_9, %c0_10], %13 {strides = array<i32>} : memref<1x128x384xf32, #tpu.memory_space<vmem>>, vector<1x128x384xf32>,
    return
  }
  func.func @transform_0(%arg0: i32, %arg1: i32) -> (i32, i32, i32) {
    %c0_i32 = arith.constant 0 : i32
    %c0_i32_0 = arith.constant 0 : i32
    return %arg0, %c0_i32, %arg1 : i32, i32, i32
  }
  func.func @transform_1(%arg0: i32, %arg1: i32) -> (i32, i32) {
    %c0_i32 = arith.constant 0 : i32
    %c0_i32_0 = arith.constant 0 : i32
    %c0_i32_1 = arith.constant 0 : i32
    return %c0_i32, %c0_i32_0 : i32, i32
  }
  func.func @transform_2(%arg0: i32, %arg1: i32) -> (i32, i32) {
    %c0_i32 = arith.constant 0 : i32
    %c0_i32_0 = arith.constant 0 : i32
    %c0_i32_1 = arith.constant 0 : i32
    return %c0_i32, %c0_i32_0 : i32, i32
  }
  func.func @transform_3(%arg0: i32, %arg1: i32) -> (i32, i32, i32) {
    %c0_i32 = arith.constant 0 : i32
    %c0_i32_0 = arith.constant 0 : i32
    return %arg0, %c0_i32, %arg1 : i32, i32, i32
  }
}

</mosaic_0001>

<llo_original>
// kernel: tpu_custom_call.1
$region0: #{tpu_custom_call.1}
  #allocation0 [shape = 'u32[]', space=smem, size = 0x4, offset = 0x4, fixed_abs, tag = 'smem constant byte address 0x4 - core index']
  #allocation1 [shape = 'u32[144,128]{1,0:T(1,128)}', space=vmem, size = 0x12000, scoped, tag = 'internal scratch']
  %s0 = inlined_call_operand.vmem [shape: f32[1,32,729], index: 0, kind: input, shape index: {}]
  %s1 = inlined_call_operand.vmem [shape: f32[128,32], index: 1, kind: input, shape index: {}]
  %s2 = inlined_call_operand.vmem [shape: f32[128,1], index: 2, kind: input, shape index: {}]
  %s3 = inlined_call_operand.vmem [shape: f32[1,128,729], index: 3, kind: output, shape index: {}]
  %s4 = sld [smem:[#allocation0]]
  $region87: #{tpu_custom_call.1} parent=0
    _
  %s6 = ssub.s32 1, %s4
  %s7 = scalar_select 0, %s6, %s4
  $region1: #{tpu_custom_call.1} parent=0
    #allocation2 [shape = 'u8[98304]{0}', space=vmem, size = 0x18000, scoped, tag = 'input window, operand 0']
    #allocation3 [shape = 'u8[393216]{0}', space=vmem, size = 0x60000, scoped, tag = 'output window, operand 0']
    loop: start=0, step=1, limit=4
    $region2: #{tpu_custom_call.1} parent=1 // loop_pre_header
      _
    $region3: #{tpu_custom_call.1} parent=1 // loop_header
      %s9 = sphi 0, %s13
      %p10 = scmp.ge.s32.totalorder %s9, 4
      %s16 = sphi 0, %s28
      %s17 = sphi 0, %s24
      %s18 = sphi 0, %s16
      %s19 = sphi 0, %s17
      %s20 = sphi 0, %s18
      %s21 = sphi 0, %s19
      %s33 = sphi 0, %s35
      %s36 = sphi 0, %s33
      %s37 = sphi 0, %s36
      %s53 = sphi 0, %s37
      %s57 = sphi 0, %s57
      %s59 = sphi 0, %s57
      %s60 = sphi 0, %s59
      %s74 = sphi 0, %s60
      %s78 = sphi 0, %s78
      %s80 = sphi 0, %s78
      %s81 = sphi 0, %s80
      %s95 = sphi 0, %s81
      %s103 = sphi 0, %s105
      %s106 = sphi 0, %s103
      %s107 = sphi 0, %s106
      %s123 = sphi 0, %s107
    $region4: #{tpu_custom_call.1} parent=1 // loop_header_branch
      %12 = sbr.rel (%p10) target = $region8
    $region5: #{tpu_custom_call.1} parent=1 // loop_body
      %s14 = ssub.s32 %s9, 1
      %s15 = ssub.s32 %s9, 2
      %s22 = sadd.s32 1, %s17
      %p23 = scmp.ge.s32.totalorder %s22, 2
      %s24 = scalar_select %p23, 0, %s22
      %s25 = sadd.s32 1, %s16
      %s26 = scalar_select %p23, %s25, %s16
      %p27 = scmp.ge.s32.totalorder %s26, 1
      %s28 = scalar_select %p27, 0, %s26
      %s29 = ssub.s32 %s16, %s28
      %s30 = ssub.s32 %s17, %s24
      %s31 = sor.u32 %s29, %s30
      %p32 = scmp.eq.s32.totalorder %s31, 0
      %s34 = sadd.s32 %s33, 1
      %s35 = scalar_select %p32, %s33, %s34
      %p38 = pneg %p32
      %p39 = scmp.eq.s32.totalorder %s9, 1
      %p40 = por %p38, %p39
      %p41 = scmp.ne.s32.totalorder %s33, %s36
      %p42 = scmp.eq.s32.totalorder %s9, 0
      %p43 = por %p41, %p42
      %p44 = scmp.ne.s32.totalorder %s33, %s36
      %p45 = scmp.eq.s32.totalorder %s14, 1
      %p46 = por %p44, %p45
      %p47 = scmp.ne.s32.totalorder %s36, %s37
      %p48 = scmp.eq.s32.totalorder %s14, 0
      %p49 = por %p47, %p48
      %p50 = scmp.ne.s32.totalorder %s36, %s37
      %p51 = scmp.eq.s32.totalorder %s15, 1
      %p52 = por %p50, %p51
      %p54 = scmp.ne.s32.totalorder %s37, %s53
      %p55 = scmp.eq.s32.totalorder %s15, 0
      %p56 = por %p54, %p55
      %s58 = sadd.s32 %s57, 1
      %p61 = scmp.eq.s32.totalorder %s9, 1
      %p62 = scmp.ne.s32.totalorder %s57, %s59
      %p63 = scmp.eq.s32.totalorder %s9, 0
      %p64 = por %p62, %p63
      %p65 = scmp.ne.s32.totalorder %s57, %s59
      %p66 = scmp.eq.s32.totalorder %s14, 1
      %p67 = por %p65, %p66
      %p68 = scmp.ne.s32.totalorder %s59, %s60
      %p69 = scmp.eq.s32.totalorder %s14, 0
      %p70 = por %p68, %p69
      %p71 = scmp.ne.s32.totalorder %s59, %s60
      %p72 = scmp.eq.s32.totalorder %s15, 1
      %p73 = por %p71, %p72
      %p75 = scmp.ne.s32.totalorder %s60, %s74
      %p76 = scmp.eq.s32.totalorder %s15, 0
      %p77 = por %p75, %p76
      %s79 = sadd.s32 %s78, 1
      %p82 = scmp.eq.s32.totalorder %s9, 1
      %p83 = scmp.ne.s32.totalorder %s78, %s80
      %p84 = scmp.eq.s32.totalorder %s9, 0
      %p85 = por %p83, %p84
      %p86 = scmp.ne.s32.totalorder %s78, %s80
      %p87 = scmp.eq.s32.totalorder %s14, 1
      %p88 = por %p86, %p87
      %p89 = scmp.ne.s32.totalorder %s80, %s81
      %p90 = scmp.eq.s32.totalorder %s14, 0
      %p91 = por %p89, %p90
      %p92 = scmp.ne.s32.totalorder %s80, %s81
      %p93 = scmp.eq.s32.totalorder %s15, 1
      %p94 = por %p92, %p93
      %p96 = scmp.ne.s32.totalorder %s81, %s95
      %p97 = scmp.eq.s32.totalorder %s15, 0
      %p98 = por %p96, %p97
      %s99 = ssub.s32 %s16, %s28
      %s100 = ssub.s32 %s17, %s24
      %s101 = sor.u32 %s99, %s100
      %p102 = scmp.eq.s32.totalorder %s101, 0
      %s104 = sadd.s32 %s103, 1
      %s105 = scalar_select %p102, %s103, %s104
      %p108 = pneg %p102
      %p109 = scmp.eq.s32.totalorder %s9, 1
      %p110 = por %p108, %p109
      %p111 = scmp.ne.s32.totalorder %s103, %s106
      %p112 = scmp.eq.s32.totalorder %s9, 0
      %p113 = por %p111, %p112
      %p114 = scmp.ne.s32.totalorder %s103, %s106
      %p115 = scmp.eq.s32.totalorder %s14, 1
      %p116 = por %p114, %p115
      %p117 = scmp.ne.s32.totalorder %s106, %s107
      %p118 = scmp.eq.s32.totalorder %s14, 0
      %p119 = por %p117, %p118
      %p120 = scmp.ne.s32.totalorder %s106, %s107
      %p121 = scmp.eq.s32.totalorder %s15, 1
      %p122 = por %p120, %p121
      %p124 = scmp.ne.s32.totalorder %s107, %s123
      %p125 = scmp.eq.s32.totalorder %s15, 0
      %p126 = por %p124, %p125
      %p127 = scmp.le.s32.totalorder 1, %s9
      %p128 = scmp.lt.s32.totalorder %s9, 3
      %p129 = pnand %p127, %p128
      %p130 = pneg %p129
      // Predicated region
      $region9: #{tpu_custom_call.1} parent=5 // pred_check
        _
      $region10: #{tpu_custom_call.1} parent=5 // pred_check_branch
        %132 = sbr.rel (%p129) target = $region12
      $region11: #{tpu_custom_call.1} parent=5 // pred_region
        %s133 = ssub.s32 %s9, 1
        // Predicated region
        $region13: #{tpu_custom_call.1} parent=11 // pred_check
          %p134 = pneg %p70
        $region14: #{tpu_custom_call.1} parent=11 // pred_check_branch
          %136 = sbr.rel (%p134) target = $region16
        $region15: #{tpu_custom_call.1} parent=11 // pred_region
          _
        $region16: #{tpu_custom_call.1} parent=11 // pred_fallthru
          _
        // Predicated region
        $region17: #{tpu_custom_call.1} parent=11 // pred_check
          %p137 = pneg %p91
        $region18: #{tpu_custom_call.1} parent=11 // pred_check_branch
          %139 = sbr.rel (%p137) target = $region20
        $region19: #{tpu_custom_call.1} parent=11 // pred_region
          _
        $region20: #{tpu_custom_call.1} parent=11 // pred_fallthru
          _
      $region12: #{tpu_custom_call.1} parent=5 // pred_fallthru
        _
      %p140 = scmp.lt.s32.totalorder %s9, 2
      // Predicated region
      $region21: #{tpu_custom_call.1} parent=5 // pred_check
        %p141 = pneg %p140
      $region22: #{tpu_custom_call.1} parent=5 // pred_check_branch
        %143 = sbr.rel (%p141) target = $region24
      $region23: #{tpu_custom_call.1} parent=5 // pred_region
        // Predicated region
        $region25: #{tpu_custom_call.1} parent=23 // pred_check
          %p144 = pneg %p43
        $region26: #{tpu_custom_call.1} parent=23 // pred_check_branch
          %146 = sbr.rel (%p144) target = $region28
        $region27: #{tpu_custom_call.1} parent=23 // pred_region
          %s147 = sand.u32 %s33, 1
          %s148 = sand.u32 %s33, 1
          %s149 = smul.addr %s148, 96
          %s150 = scalar_lea.vmem [#allocation2], %s149
          %s151 = smul.u32 3, %s17
          %s152 = smul.addr %s16, 24
          %s153 = sadd.s32 %s151, %s152
          %s154 = smul.addr %s153, 8
          %s155 = scalar_lea.vmem %s0, %s154
          // Predicated region
          $region29: #{tpu_custom_call.1} parent=27 // pred_check
            _
          $region30: #{tpu_custom_call.1} parent=27 // pred_check_branch
            %157 = sbr.rel (0) target = $region32
          $region31: #{tpu_custom_call.1} parent=27 // pred_region
            // Predicated region
            $region33: #{tpu_custom_call.1} parent=31 // pred_check
              _
            $region34: #{tpu_custom_call.1} parent=31 // pred_check_branch
              %159 = sbr.rel (0) target = $region36
            $region35: #{tpu_custom_call.1} parent=31 // pred_region
              loop: start=0, step=1, limit=1
              $region37: #{tpu_custom_call.1} parent=35 // loop_pre_header
                _
              $region38: #{tpu_custom_call.1} parent=35 // loop_header
                %s161 = sphi 0, %s165
                %p162 = scmp.ge.s32.totalorder %s161, 1
                %s166 = sphi %s155, %s155
                %s167 = sphi %s150, %s150
              $region39: #{tpu_custom_call.1} parent=35 // loop_header_branch
                %164 = sbr.rel (%p162) target = $region43
              $region40: #{tpu_custom_call.1} parent=35 // loop_body
                %v168 = vld [vmem:[%s166] sm:$0xff]
                %169 = vst [vmem:[%s167] sm:$0xff] %v168
                %v170 = vld [vmem:[%s166 + $0x8] sm:$0xff]
                %171 = vst [vmem:[%s167 + $0x8] sm:$0xff] %v170
                %v172 = vld [vmem:[%s166 + $0x10] sm:$0xff]
                %173 = vst [vmem:[%s167 + $0x10] sm:$0xff] %v172
                %v174 = vld [vmem:[%s166 + $0x30] sm:$0xff]
                %175 = vst [vmem:[%s167 + $0x18] sm:$0xff] %v174
                %v176 = vld [vmem:[%s166 + $0x38] sm:$0xff]
                %177 = vst [vmem:[%s167 + $0x20] sm:$0xff] %v176
                %v178 = vld [vmem:[%s166 + $0x40] sm:$0xff]
                %179 = vst [vmem:[%s167 + $0x28] sm:$0xff] %v178
                %v180 = vld [vmem:[%s166 + $0x60] sm:$0xff]
                %181 = vst [vmem:[%s167 + $0x30] sm:$0xff] %v180
                %v182 = vld [vmem:[%s166 + $0x68] sm:$0xff]
                %183 = vst [vmem:[%s167 + $0x38] sm:$0xff] %v182
                %v184 = vld [vmem:[%s166 + $0x70] sm:$0xff]
                %185 = vst [vmem:[%s167 + $0x40] sm:$0xff] %v184
                %v186 = vld [vmem:[%s166 + $0x90] sm:$0xff]
                %187 = vst [vmem:[%s167 + $0x48] sm:$0xff] %v186
                %v188 = vld [vmem:[%s166 + $0x98] sm:$0xff]
                %189 = vst [vmem:[%s167 + $0x50] sm:$0xff] %v188
                %v190 = vld [vmem:[%s166 + $0xa0] sm:$0xff]
                %191 = vst [vmem:[%s167 + $0x58] sm:$0xff] %v190
              $region41: #{tpu_custom_call.1} parent=35 // loop_footer
                %s165 = sadd.s32 1, %s161
              $region42: #{tpu_custom_call.1} parent=35 // loop_footer_branch
                %160 = sbr.rel target = $region38
              $region43: #{tpu_custom_call.1} parent=35 // loop_exit
                _
            $region36: #{tpu_custom_call.1} parent=31 // pred_fallthru
              _
            // Predicated region
            $region44: #{tpu_custom_call.1} parent=31 // pred_check
              _
            $region45: #{tpu_custom_call.1} parent=31 // pred_check_branch
              %193 = sbr.rel target = $region47
            $region46: #{tpu_custom_call.1} parent=31 // pred_region
              _
            $region47: #{tpu_custom_call.1} parent=31 // pred_fallthru
              _
          $region32: #{tpu_custom_call.1} parent=27 // pred_fallthru
            _
          %194 = vnop
        $region28: #{tpu_custom_call.1} parent=23 // pred_fallthru
          _
      $region24: #{tpu_custom_call.1} parent=5 // pred_fallthru
        _
      %p195 = scmp.le.s32.totalorder 1, %s9
      %p196 = scmp.lt.s32.totalorder %s9, 3
      %p197 = pnand %p195, %p196
      %p198 = pneg %p197
      // Predicated region
      $region48: #{tpu_custom_call.1} parent=5 // pred_check
        _
      $region49: #{tpu_custom_call.1} parent=5 // pred_check_branch
        %200 = sbr.rel (%p197) target = $region51
      $region50: #{tpu_custom_call.1} parent=5 // pred_region
        %s201 = ssub.s32 %s9, 1
        %s202 = sand.u32 %s36, 1
        %s203 = sand.u32 %s36, 1
        %s204 = smul.addr %s203, 96
        %s205 = scalar_lea.vmem [#allocation2], %s204
        // Predicated region
        $region52: #{tpu_custom_call.1} parent=50 // pred_check
          %p206 = pneg %p49
        $region53: #{tpu_custom_call.1} parent=50 // pred_check_branch
          %208 = sbr.rel (%p206) target = $region55
        $region54: #{tpu_custom_call.1} parent=50 // pred_region
          _
        $region55: #{tpu_custom_call.1} parent=50 // pred_fallthru
          _
        %s209 = sand.u32 %s36, 1
        %s210 = sand.u32 %s36, 1
        %s211 = smul.addr %s210, 96
        %s212 = scalar_lea.vmem [#allocation2], %s211
        %p213 = pneg %p49
        %p214 = pneg %p46
        %p215 = pneg %p70
        %p216 = pneg %p67
        %p217 = pneg %p91
        %p218 = pneg %p88
        %p219 = pneg %p119
        %p220 = pneg %p116
        %s221 = sand.u32 %s106, 1
        %s222 = sand.u32 %s106, 1
        %s223 = smul.addr %s222, 384
        %s224 = scalar_lea.vmem [#allocation3], %s223
        %s225 = smul.u32 3, %s19
        %s226 = smul.u32 3, %s19
        %v227 = vld [vmem:[%s205] sm:$0xff]
        %v228 = vld [vmem:[%s205 + $0x8] sm:$0xff]
        %v229 = vld [vmem:[%s205 + $0x10] sm:$0xff]
        %v230 = vld [vmem:[%s205 + $0x18] sm:$0xff]
        %v231 = vld [vmem:[%s205 + $0x20] sm:$0xff]
        %v232 = vld [vmem:[%s205 + $0x28] sm:$0xff]
        %v233 = vld [vmem:[%s205 + $0x30] sm:$0xff]
        %v234 = vld [vmem:[%s205 + $0x38] sm:$0xff]
        %v235 = vld [vmem:[%s205 + $0x40] sm:$0xff]
        %v236 = vld [vmem:[%s205 + $0x48] sm:$0xff]
        %v237 = vld [vmem:[%s205 + $0x50] sm:$0xff]
        %v238 = vld [vmem:[%s205 + $0x58] sm:$0xff]
        %v239 = vmax.f32 %v227, 0.0
        %v240 = vmax.f32 %v228, 0.0
        %v241 = vmax.f32 %v229, 0.0
        %v242 = vmax.f32 %v230, 0.0
        %v243 = vmax.f32 %v231, 0.0
        %v244 = vmax.f32 %v232, 0.0
        %v245 = vmax.f32 %v233, 0.0
        %v246 = vmax.f32 %v234, 0.0
        %v247 = vmax.f32 %v235, 0.0
        %v248 = vmax.f32 %v236, 0.0
        %v249 = vmax.f32 %v237, 0.0
        %v250 = vmax.f32 %v238, 0.0
        %v251 = vld [vmem:[%s1] sm:$0xff]
        %v252 = vld [vmem:[%s1 + $0x8] sm:$0xff]
        %v253 = vld [vmem:[%s1 + $0x10] sm:$0xff]
        %v254 = vld [vmem:[%s1 + $0x18] sm:$0xff]
        %v255 = vld [vmem:[%s1 + $0x20] sm:$0xff]
        %v256 = vld [vmem:[%s1 + $0x28] sm:$0xff]
        %v257 = vld [vmem:[%s1 + $0x30] sm:$0xff]
        %v258 = vld [vmem:[%s1 + $0x38] sm:$0xff]
        %v259 = vld [vmem:[%s1 + $0x40] sm:$0xff]
        %v260 = vld [vmem:[%s1 + $0x48] sm:$0xff]
        %v261 = vld [vmem:[%s1 + $0x50] sm:$0xff]
        %v262 = vld [vmem:[%s1 + $0x58] sm:$0xff]
        %v263 = vld [vmem:[%s1 + $0x60] sm:$0xff]
        %v264 = vld [vmem:[%s1 + $0x68] sm:$0xff]
        %v265 = vld [vmem:[%s1 + $0x70] sm:$0xff]
        %v266 = vld [vmem:[%s1 + $0x78] sm:$0xff]
        %v267 = vld [vmem:[%s2] sm:$0xff]
        %v268 = vld [vmem:[%s2 + $0x8] sm:$0xff]
        %v269 = vld [vmem:[%s2 + $0x10] sm:$0xff]
        %v270 = vld [vmem:[%s2 + $0x18] sm:$0xff]
        %v271 = vld [vmem:[%s2 + $0x20] sm:$0xff]
        %v272 = vld [vmem:[%s2 + $0x28] sm:$0xff]
        %v273 = vld [vmem:[%s2 + $0x30] sm:$0xff]
        %v274 = vld [vmem:[%s2 + $0x38] sm:$0xff]
        %v275 = vld [vmem:[%s2 + $0x40] sm:$0xff]
        %v276 = vld [vmem:[%s2 + $0x48] sm:$0xff]
        %v277 = vld [vmem:[%s2 + $0x50] sm:$0xff]
        %v278 = vld [vmem:[%s2 + $0x58] sm:$0xff]
        %v279 = vld [vmem:[%s2 + $0x60] sm:$0xff]
        %v280 = vld [vmem:[%s2 + $0x68] sm:$0xff]
        %v281 = vld [vmem:[%s2 + $0x70] sm:$0xff]
        %v282 = vld [vmem:[%s2 + $0x78] sm:$0xff]
        %284 = vset.pattern.permute.xlu0 0
        %285 = vperm.xlu0 %284, %v267
        %v286 = vpop.permute.xlu0 %285
        %289 = vset.pattern.permute.xlu0 0
        %290 = vperm.xlu0 %289, %v268
        %v291 = vpop.permute.xlu0 %290
        %294 = vset.pattern.permute.xlu0 0
        %295 = vperm.xlu0 %294, %v269
        %v296 = vpop.permute.xlu0 %295
        %299 = vset.pattern.permute.xlu0 0
        %300 = vperm.xlu0 %299, %v270
        %v301 = vpop.permute.xlu0 %300
        %304 = vset.pattern.permute.xlu0 0
        %305 = vperm.xlu0 %304, %v271
        %v306 = vpop.permute.xlu0 %305
        %309 = vset.pattern.permute.xlu0 0
        %310 = vperm.xlu0 %309, %v272
        %v311 = vpop.permute.xlu0 %310
        %314 = vset.pattern.permute.xlu0 0
        %315 = vperm.xlu0 %314, %v273
        %v316 = vpop.permute.xlu0 %315
        %319 = vset.pattern.permute.xlu0 0
        %320 = vperm.xlu0 %319, %v274
        %v321 = vpop.permute.xlu0 %320
        %324 = vset.pattern.permute.xlu0 0
        %325 = vperm.xlu0 %324, %v275
        %v326 = vpop.permute.xlu0 %325
        %329 = vset.pattern.permute.xlu0 0
        %330 = vperm.xlu0 %329, %v276
        %v331 = vpop.permute.xlu0 %330
        %334 = vset.pattern.permute.xlu0 0
        %335 = vperm.xlu0 %334, %v277
        %v336 = vpop.permute.xlu0 %335
        %339 = vset.pattern.permute.xlu0 0
        %340 = vperm.xlu0 %339, %v278
        %v341 = vpop.permute.xlu0 %340
        %344 = vset.pattern.permute.xlu0 0
        %345 = vperm.xlu0 %344, %v279
        %v346 = vpop.permute.xlu0 %345
        %349 = vset.pattern.permute.xlu0 0
        %350 = vperm.xlu0 %349, %v280
        %v351 = vpop.permute.xlu0 %350
        %354 = vset.pattern.permute.xlu0 0
        %355 = vperm.xlu0 %354, %v281
        %v356 = vpop.permute.xlu0 %355
        %359 = vset.pattern.permute.xlu0 0
        %360 = vperm.xlu0 %359, %v282
        %v361 = vpop.permute.xlu0 %360
        %vm363 = vcmask 261120
        %v365 = vsel %vm363, %v251, 0
        %v368 = vsel %vm363, %v252, 0
        %v371 = vsel %vm363, %v253, 0
        %v374 = vsel %vm363, %v254, 0
        %v377 = vsel %vm363, %v255, 0
        %v380 = vsel %vm363, %v256, 0
        %v383 = vsel %vm363, %v257, 0
        %v386 = vsel %vm363, %v258, 0
        %v389 = vsel %vm363, %v259, 0
        %v392 = vsel %vm363, %v260, 0
        %v395 = vsel %vm363, %v261, 0
        %v398 = vsel %vm363, %v262, 0
        %v401 = vsel %vm363, %v263, 0
        %v404 = vsel %vm363, %v264, 0
        %v407 = vsel %vm363, %v265, 0
        %v410 = vsel %vm363, %v266, 0
        %412 = vmatprep.subr.mxu0 %v240
        %413 = vmatpush1.msra.mxu0 %v239
        %414 = vmatprep.subr.mxu0 %v243
        %415 = vmatpush1.msra.mxu0 %v242
        %416 = vmatprep.subr.mxu0 %v246
        %417 = vmatpush1.msra.mxu0 %v245
        %418 = vmatprep.subr.mxu0 %v249
        %419 = vmatpush1.msra.mxu0 %v248
        %420 = vmatprep.subr.mxu0 0.0
        %421 = vmatpush1.msra.mxu0 0.0
        %422 = vmatprep.subr.mxu0 0.0
        %423 = vmatpush1.msra.mxu0 0.0
        %424 = vmatprep.subr.mxu0 0.0
        %425 = vmatpush1.msra.mxu0 0.0
        %426 = vmatprep.subr.mxu0 0.0
        %427 = vmatpush1.msra.mxu0 0.0
        %428 = vmatprep.subr.mxu0 0.0
        %429 = vmatpush1.msra.mxu0 0.0
        %430 = vmatprep.subr.mxu0 0.0
        %431 = vmatpush1.msra.mxu0 0.0
        %432 = vmatprep.subr.mxu0 0.0
        %433 = vmatpush1.msra.mxu0 0.0
        %434 = vmatprep.subr.mxu0 0.0
        %435 = vmatpush1.msra.mxu0 0.0
        %436 = vmatprep.subr.mxu0 0.0
        %437 = vmatpush1.msra.mxu0 0.0
        %438 = vmatprep.subr.mxu0 0.0
        %439 = vmatpush1.msra.mxu0 0.0
        %440 = vmatprep.subr.mxu0 0.0
        %441 = vmatpush1.msra.mxu0 0.0
        %442 = vmatprep.subr.mxu0 0.0
        %443 = vmatpush1.msra.mxu0 0.0
        %444 = vmatprep.subr.mxu0 0.0
        %445 = vmatpush1.msra.mxu0 0.0
        %446 = vmatprep.subr.mxu0 0.0
        %447 = vmatpush1.msra.mxu0 0.0
        %448 = vmatprep.subr.mxu0 0.0
        %449 = vmatpush1.msra.mxu0 0.0
        %450 = vmatprep.subr.mxu0 0.0
        %451 = vmatpush1.msra.mxu0 0.0
        %452 = vmatprep.subr.mxu0 0.0
        %453 = vmatpush1.msra.mxu0 0.0
        %454 = vmatprep.subr.mxu0 0.0
        %455 = vmatpush1.msra.mxu0 0.0
        %456 = vmatprep.subr.mxu0 0.0
        %457 = vmatpush1.msra.mxu0 0.0
        %458 = vmatprep.subr.mxu0 0.0
        %459 = vmatpush1.msra.mxu0 0.0
        %460 = vmatprep.subr.mxu0 0.0
        %461 = vmatpush1.msra.mxu0 0.0
        %462 = vmatprep.subr.mxu0 0.0
        %463 = vmatpush1.msra.mxu0 0.0
        %464 = vmatprep.subr.mxu0 0.0
        %465 = vmatpush1.msra.mxu0 0.0
        %466 = vmatprep.subr.mxu0 0.0
        %467 = vmatpush1.msra.mxu0 0.0
        %468 = vmatprep.subr.mxu0 0.0
        %469 = vmatpush1.msra.mxu0 0.0
        %470 = vmatprep.subr.mxu0 0.0
        %471 = vmatpush1.msra.mxu0 0.0
        %472 = vmatprep.subr.mxu0 0.0
        %473 = vmatpush1.msra.mxu0 0.0
        %474 = vmatprep.subr.mxu0 0.0
        %475 = vmatpush1.msra.mxu0 0.0
        %476 = vmatprep.mubr.f32.mxu0 0.0
        %477 = vmatmul.mubr.f32.gmra.mrb[0].mxu0 %v365
        %v478 = vpop.f32.mrb[0].mxu0
        %v479 = vadd.f32 %v286, %v478
        %v480 = vpop.f32.mrb[0].mxu0
        %v481 = vadd.f32 %v286, %v480
        %482 = vmatprep.mubr.f32.mxu0 0.0
        %483 = vmatmul.mubr.f32.gmra.mrb[0].mxu0 %v368
        %v484 = vpop.f32.mrb[0].mxu0
        %v485 = vadd.f32 %v291, %v484
        %v486 = vpop.f32.mrb[0].mxu0
        %v487 = vadd.f32 %v291, %v486
        %488 = vmatprep.mubr.f32.mxu0 0.0
        %489 = vmatmul.mubr.f32.gmra.mrb[0].mxu0 %v371
        %v490 = vpop.f32.mrb[0].mxu0
        %v491 = vadd.f32 %v296, %v490
        %v492 = vpop.f32.mrb[0].mxu0
        %v493 = vadd.f32 %v296, %v492
        %494 = vmatprep.mubr.f32.mxu0 0.0
        %495 = vmatmul.mubr.f32.gmra.mrb[0].mxu0 %v374
        %v496 = vpop.f32.mrb[0].mxu0
        %v497 = vadd.f32 %v301, %v496
        %v498 = vpop.f32.mrb[0].mxu0
        %v499 = vadd.f32 %v301, %v498
        %500 = vmatprep.mubr.f32.mxu0 0.0
        %501 = vmatmul.mubr.f32.gmra.mrb[0].mxu0 %v377
        %v502 = vpop.f32.mrb[0].mxu0
        %v503 = vadd.f32 %v306, %v502
        %v504 = vpop.f32.mrb[0].mxu0
        %v505 = vadd.f32 %v306, %v504
        %506 = vmatprep.mubr.f32.mxu0 0.0
        %507 = vmatmul.mubr.f32.gmra.mrb[0].mxu0 %v380
        %v508 = vpop.f32.mrb[0].mxu0
        %v509 = vadd.f32 %v311, %v508
        %v510 = vpop.f32.mrb[0].mxu0
        %v511 = vadd.f32 %v311, %v510
        %512 = vmatprep.mubr.f32.mxu0 0.0
        %513 = vmatmul.mubr.f32.gmra.mrb[0].mxu0 %v383
        %v514 = vpop.f32.mrb[0].mxu0
        %v515 = vadd.f32 %v316, %v514
        %v516 = vpop.f32.mrb[0].mxu0
        %v517 = vadd.f32 %v316, %v516
        %518 = vmatprep.mubr.f32.mxu0 0.0
        %519 = vmatmul.mubr.f32.gmra.mrb[0].mxu0 %v386
        %v520 = vpop.f32.mrb[0].mxu0
        %v521 = vadd.f32 %v321, %v520
        %v522 = vpop.f32.mrb[0].mxu0
        %v523 = vadd.f32 %v321, %v522
        %524 = vmatprep.mubr.f32.mxu0 0.0
        %525 = vmatmul.mubr.f32.gmra.mrb[0].mxu0 %v389
        %v526 = vpop.f32.mrb[0].mxu0
        %v527 = vadd.f32 %v326, %v526
        %v528 = vpop.f32.mrb[0].mxu0
        %v529 = vadd.f32 %v326, %v528
        %530 = vmatprep.mubr.f32.mxu0 0.0
        %531 = vmatmul.mubr.f32.gmra.mrb[0].mxu0 %v392
        %v532 = vpop.f32.mrb[0].mxu0
        %v533 = vadd.f32 %v331, %v532
        %v534 = vpop.f32.mrb[0].mxu0
        %v535 = vadd.f32 %v331, %v534
        %536 = vmatprep.mubr.f32.mxu0 0.0
        %537 = vmatmul.mubr.f32.gmra.mrb[0].mxu0 %v395
        %v538 = vpop.f32.mrb[0].mxu0
        %v539 = vadd.f32 %v336, %v538
        %v540 = vpop.f32.mrb[0].mxu0
        %v541 = vadd.f32 %v336, %v540
        %542 = vmatprep.mubr.f32.mxu0 0.0
        %543 = vmatmul.mubr.f32.gmra.mrb[0].mxu0 %v398
        %v544 = vpop.f32.mrb[0].mxu0
        %v545 = vadd.f32 %v341, %v544
        %v546 = vpop.f32.mrb[0].mxu0
        %v547 = vadd.f32 %v341, %v546
        %548 = vmatprep.mubr.f32.mxu0 0.0
        %549 = vmatmul.mubr.f32.gmra.mrb[0].mxu0 %v401
        %v550 = vpop.f32.mrb[0].mxu0
        %v551 = vadd.f32 %v346, %v550
        %v552 = vpop.f32.mrb[0].mxu0
        %v553 = vadd.f32 %v346, %v552
        %554 = vmatprep.mubr.f32.mxu0 0.0
        %555 = vmatmul.mubr.f32.gmra.mrb[0].mxu0 %v404
        %v556 = vpop.f32.mrb[0].mxu0
        %v557 = vadd.f32 %v351, %v556
        %v558 = vpop.f32.mrb[0].mxu0
        %v559 = vadd.f32 %v351, %v558
        %560 = vmatprep.mubr.f32.mxu0 0.0
        %561 = vmatmul.mubr.f32.gmra.mrb[0].mxu0 %v407
        %v562 = vpop.f32.mrb[0].mxu0
        %v563 = vadd.f32 %v356, %v562
        %v564 = vpop.f32.mrb[0].mxu0
        %v565 = vadd.f32 %v356, %v564
        %566 = vmatprep.mubr.f32.mxu0 0.0
        %567 = vmatmul.mubr.f32.gmra.mrb[0].mxu0 %v410
        %v568 = vpop.f32.mrb[0].mxu0
        %v569 = vadd.f32 %v361, %v568
        %v570 = vpop.f32.mrb[0].mxu0
        %v571 = vadd.f32 %v361, %v570
        %572 = vdwg.mxu0
        %573 = vmatprep.subr.mxu0 0.0
        %574 = vmatpush1.msra.mxu0 %v241
        %575 = vmatprep.subr.mxu0 0.0
        %576 = vmatpush1.msra.mxu0 %v244
        %577 = vmatprep.subr.mxu0 0.0
        %578 = vmatpush1.msra.mxu0 %v247
        %579 = vmatprep.subr.mxu0 0.0
        %580 = vmatpush1.msra.mxu0 %v250
        %581 = vmatprep.subr.mxu0 0.0
        %582 = vmatpush1.msra.mxu0 0.0
        %583 = vmatprep.subr.mxu0 0.0
        %584 = vmatpush1.msra.mxu0 0.0
        %585 = vmatprep.subr.mxu0 0.0
        %586 = vmatpush1.msra.mxu0 0.0
        %587 = vmatprep.subr.mxu0 0.0
        %588 = vmatpush1.msra.mxu0 0.0
        %589 = vmatprep.subr.mxu0 0.0
        %590 = vmatpush1.msra.mxu0 0.0
        %591 = vmatprep.subr.mxu0 0.0
        %592 = vmatpush1.msra.mxu0 0.0
        %593 = vmatprep.subr.mxu0 0.0
        %594 = vmatpush1.msra.mxu0 0.0
        %595 = vmatprep.subr.mxu0 0.0
        %596 = vmatpush1.msra.mxu0 0.0
        %597 = vmatprep.subr.mxu0 0.0
        %598 = vmatpush1.msra.mxu0 0.0
        %599 = vmatprep.subr.mxu0 0.0
        %600 = vmatpush1.msra.mxu0 0.0
        %601 = vmatprep.subr.mxu0 0.0
        %602 = vmatpush1.msra.mxu0 0.0
        %603 = vmatprep.subr.mxu0 0.0
        %604 = vmatpush1.msra.mxu0 0.0
        %605 = vmatprep.subr.mxu0 0.0
        %606 = vmatpush1.msra.mxu0 0.0
        %607 = vmatprep.subr.mxu0 0.0
        %608 = vmatpush1.msra.mxu0 0.0
        %609 = vmatprep.subr.mxu0 0.0
        %610 = vmatpush1.msra.mxu0 0.0
        %611 = vmatprep.subr.mxu0 0.0
        %612 = vmatpush1.msra.mxu0 0.0
        %613 = vmatprep.subr.mxu0 0.0
        %614 = vmatpush1.msra.mxu0 0.0
        %615 = vmatprep.subr.mxu0 0.0
        %616 = vmatpush1.msra.mxu0 0.0
        %617 = vmatprep.subr.mxu0 0.0
        %618 = vmatpush1.msra.mxu0 0.0
        %619 = vmatprep.subr.mxu0 0.0
        %620 = vmatpush1.msra.mxu0 0.0
        %621 = vmatprep.subr.mxu0 0.0
        %622 = vmatpush1.msra.mxu0 0.0
        %623 = vmatprep.subr.mxu0 0.0
        %624 = vmatpush1.msra.mxu0 0.0
        %625 = vmatprep.subr.mxu0 0.0
        %626 = vmatpush1.msra.mxu0 0.0
        %627 = vmatprep.subr.mxu0 0.0
        %628 = vmatpush1.msra.mxu0 0.0
        %629 = vmatprep.subr.mxu0 0.0
        %630 = vmatpush1.msra.mxu0 0.0
        %631 = vmatprep.subr.mxu0 0.0
        %632 = vmatpush1.msra.mxu0 0.0
        %633 = vmatprep.subr.mxu0 0.0
        %634 = vmatpush1.msra.mxu0 0.0
        %635 = vmatprep.subr.mxu0 0.0
        %636 = vmatpush1.msra.mxu0 0.0
        %637 = vmatprep.mubr.f32.mxu0 0.0
        %638 = vmatmul.mubr.f32.gmra.mrb[0].mxu0 %v365
        %v639 = vpop.f32.mrb[0].mxu0
        %v640 = vadd.f32 %v286, %v639
        %v641 = vpop.f32.mrb[0].mxu0
        %642 = vmatprep.mubr.f32.mxu0 0.0
        %643 = vmatmul.mubr.f32.gmra.mrb[0].mxu0 %v368
        %v644 = vpop.f32.mrb[0].mxu0
        %v645 = vadd.f32 %v291, %v644
        %v646 = vpop.f32.mrb[0].mxu0
        %647 = vmatprep.mubr.f32.mxu0 0.0
        %648 = vmatmul.mubr.f32.gmra.mrb[0].mxu0 %v371
        %v649 = vpop.f32.mrb[0].mxu0
        %v650 = vadd.f32 %v296, %v649
        %v651 = vpop.f32.mrb[0].mxu0
        %652 = vmatprep.mubr.f32.mxu0 0.0
        %653 = vmatmul.mubr.f32.gmra.mrb[0].mxu0 %v374
        %v654 = vpop.f32.mrb[0].mxu0
        %v655 = vadd.f32 %v301, %v654
        %v656 = vpop.f32.mrb[0].mxu0
        %657 = vmatprep.mubr.f32.mxu0 0.0
        %658 = vmatmul.mubr.f32.gmra.mrb[0].mxu0 %v377
        %v659 = vpop.f32.mrb[0].mxu0
        %v660 = vadd.f32 %v306, %v659
        %v661 = vpop.f32.mrb[0].mxu0
        %662 = vmatprep.mubr.f32.mxu0 0.0
        %663 = vmatmul.mubr.f32.gmra.mrb[0].mxu0 %v380
        %v664 = vpop.f32.mrb[0].mxu0
        %v665 = vadd.f32 %v311, %v664
        %v666 = vpop.f32.mrb[0].mxu0
        %667 = vmatprep.mubr.f32.mxu0 0.0
        %668 = vmatmul.mubr.f32.gmra.mrb[0].mxu0 %v383
        %v669 = vpop.f32.mrb[0].mxu0
        %v670 = vadd.f32 %v316, %v669
        %v671 = vpop.f32.mrb[0].mxu0
        %672 = vmatprep.mubr.f32.mxu0 0.0
        %673 = vmatmul.mubr.f32.gmra.mrb[0].mxu0 %v386
        %v674 = vpop.f32.mrb[0].mxu0
        %v675 = vadd.f32 %v321, %v674
        %v676 = vpop.f32.mrb[0].mxu0
        %677 = vmatprep.mubr.f32.mxu0 0.0
        %678 = vmatmul.mubr.f32.gmra.mrb[0].mxu0 %v389
        %v679 = vpop.f32.mrb[0].mxu0
        %v680 = vadd.f32 %v326, %v679
        %v681 = vpop.f32.mrb[0].mxu0
        %682 = vmatprep.mubr.f32.mxu0 0.0
        %683 = vmatmul.mubr.f32.gmra.mrb[0].mxu0 %v392
        %v684 = vpop.f32.mrb[0].mxu0
        %v685 = vadd.f32 %v331, %v684
        %v686 = vpop.f32.mrb[0].mxu0
        %687 = vmatprep.mubr.f32.mxu0 0.0
        %688 = vmatmul.mubr.f32.gmra.mrb[0].mxu0 %v395
        %v689 = vpop.f32.mrb[0].mxu0
        %v690 = vadd.f32 %v336, %v689
        %v691 = vpop.f32.mrb[0].mxu0
        %692 = vmatprep.mubr.f32.mxu0 0.0
        %693 = vmatmul.mubr.f32.gmra.mrb[0].mxu0 %v398
        %v694 = vpop.f32.mrb[0].mxu0
        %v695 = vadd.f32 %v341, %v694
        %v696 = vpop.f32.mrb[0].mxu0
        %697 = vmatprep.mubr.f32.mxu0 0.0
        %698 = vmatmul.mubr.f32.gmra.mrb[0].mxu0 %v401
        %v699 = vpop.f32.mrb[0].mxu0
        %v700 = vadd.f32 %v346, %v699
        %v701 = vpop.f32.mrb[0].mxu0
        %702 = vmatprep.mubr.f32.mxu0 0.0
        %703 = vmatmul.mubr.f32.gmra.mrb[0].mxu0 %v404
        %v704 = vpop.f32.mrb[0].mxu0
        %v705 = vadd.f32 %v351, %v704
        %v706 = vpop.f32.mrb[0].mxu0
        %707 = vmatprep.mubr.f32.mxu0 0.0
        %708 = vmatmul.mubr.f32.gmra.mrb[0].mxu0 %v407
        %v709 = vpop.f32.mrb[0].mxu0
        %v710 = vadd.f32 %v356, %v709
        %v711 = vpop.f32.mrb[0].mxu0
        %712 = vmatprep.mubr.f32.mxu0 0.0
        %713 = vmatmul.mubr.f32.gmra.mrb[0].mxu0 %v410
        %v714 = vpop.f32.mrb[0].mxu0
        %v715 = vadd.f32 %v361, %v714
        %v716 = vpop.f32.mrb[0].mxu0
        %717 = vdwg.mxu0
        %v718 = vmax.f32 %v479, 0.0
        %v719 = vmax.f32 %v481, 0.0
        %v720 = vmax.f32 %v640, 0.0
        %v721 = vmax.f32 %v485, 0.0
        %v722 = vmax.f32 %v487, 0.0
        %v723 = vmax.f32 %v645, 0.0
        %v724 = vmax.f32 %v491, 0.0
        %v725 = vmax.f32 %v493, 0.0
        %v726 = vmax.f32 %v650, 0.0
        %v727 = vmax.f32 %v497, 0.0
        %v728 = vmax.f32 %v499, 0.0
        %v729 = vmax.f32 %v655, 0.0
        %v730 = vmax.f32 %v503, 0.0
        %v731 = vmax.f32 %v505, 0.0
        %v732 = vmax.f32 %v660, 0.0
        %v733 = vmax.f32 %v509, 0.0
        %v734 = vmax.f32 %v511, 0.0
        %v735 = vmax.f32 %v665, 0.0
        %v736 = vmax.f32 %v515, 0.0
        %v737 = vmax.f32 %v517, 0.0
        %v738 = vmax.f32 %v670, 0.0
        %v739 = vmax.f32 %v521, 0.0
        %v740 = vmax.f32 %v523, 0.0
        %v741 = vmax.f32 %v675, 0.0
        %v742 = vmax.f32 %v527, 0.0
        %v743 = vmax.f32 %v529, 0.0
        %v744 = vmax.f32 %v680, 0.0
        %v745 = vmax.f32 %v533, 0.0
        %v746 = vmax.f32 %v535, 0.0
        %v747 = vmax.f32 %v685, 0.0
        %v748 = vmax.f32 %v539, 0.0
        %v749 = vmax.f32 %v541, 0.0
        %v750 = vmax.f32 %v690, 0.0
        %v751 = vmax.f32 %v545, 0.0
        %v752 = vmax.f32 %v547, 0.0
        %v753 = vmax.f32 %v695, 0.0
        %v754 = vmax.f32 %v551, 0.0
        %v755 = vmax.f32 %v553, 0.0
        %v756 = vmax.f32 %v700, 0.0
        %v757 = vmax.f32 %v557, 0.0
        %v758 = vmax.f32 %v559, 0.0
        %v759 = vmax.f32 %v705, 0.0
        %v760 = vmax.f32 %v563, 0.0
        %v761 = vmax.f32 %v565, 0.0
        %v762 = vmax.f32 %v710, 0.0
        %v763 = vmax.f32 %v569, 0.0
        %v764 = vmax.f32 %v571, 0.0
        %v765 = vmax.f32 %v715, 0.0
        %766 = vst [vmem:[%s224] sm:$0xff] %v718
        %767 = vst [vmem:[%s224 + $0x8] sm:$0xff] %v719
        %768 = vst [vmem:[%s224 + $0x10] sm:$0xff] %v720
        %769 = vst [vmem:[%s224 + $0x18] sm:$0xff] %v721
        %770 = vst [vmem:[%s224 + $0x20] sm:$0xff] %v722
        %771 = vst [vmem:[%s224 + $0x28] sm:$0xff] %v723
        %772 = vst [vmem:[%s224 + $0x30] sm:$0xff] %v724
        %773 = vst [vmem:[%s224 + $0x38] sm:$0xff] %v725
        %774 = vst [vmem:[%s224 + $0x40] sm:$0xff] %v726
        %775 = vst [vmem:[%s224 + $0x48] sm:$0xff] %v727
        %776 = vst [vmem:[%s224 + $0x50] sm:$0xff] %v728
        %777 = vst [vmem:[%s224 + $0x58] sm:$0xff] %v729
        %778 = vst [vmem:[%s224 + $0x60] sm:$0xff] %v730
        %779 = vst [vmem:[%s224 + $0x68] sm:$0xff] %v731
        %780 = vst [vmem:[%s224 + $0x70] sm:$0xff] %v732
        %781 = vst [vmem:[%s224 + $0x78] sm:$0xff] %v733
        %782 = vst [vmem:[%s224 + $0x80] sm:$0xff] %v734
        %783 = vst [vmem:[%s224 + $0x88] sm:$0xff] %v735
        %784 = vst [vmem:[%s224 + $0x90] sm:$0xff] %v736
        %785 = vst [vmem:[%s224 + $0x98] sm:$0xff] %v737
        %786 = vst [vmem:[%s224 + $0xa0] sm:$0xff] %v738
        %787 = vst [vmem:[%s224 + $0xa8] sm:$0xff] %v739
        %788 = vst [vmem:[%s224 + $0xb0] sm:$0xff] %v740
        %789 = vst [vmem:[%s224 + $0xb8] sm:$0xff] %v741
        %790 = vst [vmem:[%s224 + $0xc0] sm:$0xff] %v742
        %791 = vst [vmem:[%s224 + $0xc8] sm:$0xff] %v743
        %792 = vst [vmem:[%s224 + $0xd0] sm:$0xff] %v744
        %793 = vst [vmem:[%s224 + $0xd8] sm:$0xff] %v745
        %794 = vst [vmem:[%s224 + $0xe0] sm:$0xff] %v746
        %795 = vst [vmem:[%s224 + $0xe8] sm:$0xff] %v747
        %796 = vst [vmem:[%s224 + $0xf0] sm:$0xff] %v748
        %797 = vst [vmem:[%s224 + $0xf8] sm:$0xff] %v749
        %798 = vst [vmem:[%s224 + $0x100] sm:$0xff] %v750
        %799 = vst [vmem:[%s224 + $0x108] sm:$0xff] %v751
        %800 = vst [vmem:[%s224 + $0x110] sm:$0xff] %v752
        %801 = vst [vmem:[%s224 + $0x118] sm:$0xff] %v753
        %802 = vst [vmem:[%s224 + $0x120] sm:$0xff] %v754
        %803 = vst [vmem:[%s224 + $0x128] sm:$0xff] %v755
        %804 = vst [vmem:[%s224 + $0x130] sm:$0xff] %v756
        %805 = vst [vmem:[%s224 + $0x138] sm:$0xff] %v757
        %806 = vst [vmem:[%s224 + $0x140] sm:$0xff] %v758
        %807 = vst [vmem:[%s224 + $0x148] sm:$0xff] %v759
        %808 = vst [vmem:[%s224 + $0x150] sm:$0xff] %v760
        %809 = vst [vmem:[%s224 + $0x158] sm:$0xff] %v761
        %810 = vst [vmem:[%s224 + $0x160] sm:$0xff] %v762
        %811 = vst [vmem:[%s224 + $0x168] sm:$0xff] %v763
        %812 = vst [vmem:[%s224 + $0x170] sm:$0xff] %v764
        %813 = vst [vmem:[%s224 + $0x178] sm:$0xff] %v765
        %s814 = sand.u32 %s106, 1
        %s815 = sand.u32 %s106, 1
        %s816 = smul.addr %s815, 384
        %s817 = scalar_lea.vmem [#allocation3], %s816
        // Predicated region
        $region56: #{tpu_custom_call.1} parent=50 // pred_check
          %p818 = pneg %p116
        $region57: #{tpu_custom_call.1} parent=50 // pred_check_branch
          %820 = sbr.rel (%p818) target = $region59
        $region58: #{tpu_custom_call.1} parent=50 // pred_region
          %s821 = smul.u32 3, %s19
          %s822 = smul.addr %s18, 96
          %s823 = sadd.s32 %s821, %s822
          %s824 = smul.addr %s823, 8
          %s825 = scalar_lea.vmem %s3, %s824
          // Predicated region
          $region60: #{tpu_custom_call.1} parent=58 // pred_check
            _
          $region61: #{tpu_custom_call.1} parent=58 // pred_check_branch
            %827 = sbr.rel (0) target = $region63
          $region62: #{tpu_custom_call.1} parent=58 // pred_region
            // Predicated region
            $region64: #{tpu_custom_call.1} parent=62 // pred_check
              _
            $region65: #{tpu_custom_call.1} parent=62 // pred_check_branch
              %829 = sbr.rel (0) target = $region67
            $region66: #{tpu_custom_call.1} parent=62 // pred_region
              loop: start=0, step=1, limit=1
              $region68: #{tpu_custom_call.1} parent=66 // loop_pre_header
                _
              $region69: #{tpu_custom_call.1} parent=66 // loop_header
                %s831 = sphi 0, %s835
                %p832 = scmp.ge.s32.totalorder %s831, 1
                %s836 = sphi %s817, %s817
                %s837 = sphi %s825, %s825
              $region70: #{tpu_custom_call.1} parent=66 // loop_header_branch
                %834 = sbr.rel (%p832) target = $region74
              $region71: #{tpu_custom_call.1} parent=66 // loop_body
                %v838 = vld [vmem:[%s836] sm:$0xff]
                %839 = vst [vmem:[%s837] sm:$0xff] %v838
                %v840 = vld [vmem:[%s836 + $0x8] sm:$0xff]
                %841 = vst [vmem:[%s837 + $0x8] sm:$0xff] %v840
                %v842 = vld [vmem:[%s836 + $0x10] sm:$0xff]
                %843 = vst [vmem:[%s837 + $0x10] sm:$0xff] %v842
                %v844 = vld [vmem:[%s836 + $0x18] sm:$0xff]
                %845 = vst [vmem:[%s837 + $0x30] sm:$0xff] %v844
                %v846 = vld [vmem:[%s836 + $0x20] sm:$0xff]
                %847 = vst [vmem:[%s837 + $0x38] sm:$0xff] %v846
                %v848 = vld [vmem:[%s836 + $0x28] sm:$0xff]
                %849 = vst [vmem:[%s837 + $0x40] sm:$0xff] %v848
                %v850 = vld [vmem:[%s836 + $0x30] sm:$0xff]
                %851 = vst [vmem:[%s837 + $0x60] sm:$0xff] %v850
                %v852 = vld [vmem:[%s836 + $0x38] sm:$0xff]
                %853 = vst [vmem:[%s837 + $0x68] sm:$0xff] %v852
                %v854 = vld [vmem:[%s836 + $0x40] sm:$0xff]
                %855 = vst [vmem:[%s837 + $0x70] sm:$0xff] %v854
                %v856 = vld [vmem:[%s836 + $0x48] sm:$0xff]
                %857 = vst [vmem:[%s837 + $0x90] sm:$0xff] %v856
                %v858 = vld [vmem:[%s836 + $0x50] sm:$0xff]
                %859 = vst [vmem:[%s837 + $0x98] sm:$0xff] %v858
                %v860 = vld [vmem:[%s836 + $0x58] sm:$0xff]
                %861 = vst [vmem:[%s837 + $0xa0] sm:$0xff] %v860
                %v862 = vld [vmem:[%s836 + $0x60] sm:$0xff]
                %863 = vst [vmem:[%s837 + $0xc0] sm:$0xff] %v862
                %v864 = vld [vmem:[%s836 + $0x68] sm:$0xff]
                %865 = vst [vmem:[%s837 + $0xc8] sm:$0xff] %v864
                %v866 = vld [vmem:[%s836 + $0x70] sm:$0xff]
                %867 = vst [vmem:[%s837 + $0xd0] sm:$0xff] %v866
                %v868 = vld [vmem:[%s836 + $0x78] sm:$0xff]
                %869 = vst [vmem:[%s837 + $0xf0] sm:$0xff] %v868
                %v870 = vld [vmem:[%s836 + $0x80] sm:$0xff]
                %871 = vst [vmem:[%s837 + $0xf8] sm:$0xff] %v870
                %v872 = vld [vmem:[%s836 + $0x88] sm:$0xff]
                %873 = vst [vmem:[%s837 + $0x100] sm:$0xff] %v872
                %v874 = vld [vmem:[%s836 + $0x90] sm:$0xff]
                %875 = vst [vmem:[%s837 + $0x120] sm:$0xff] %v874
                %v876 = vld [vmem:[%s836 + $0x98] sm:$0xff]
                %877 = vst [vmem:[%s837 + $0x128] sm:$0xff] %v876
                %v878 = vld [vmem:[%s836 + $0xa0] sm:$0xff]
                %879 = vst [vmem:[%s837 + $0x130] sm:$0xff] %v878
                %v880 = vld [vmem:[%s836 + $0xa8] sm:$0xff]
                %881 = vst [vmem:[%s837 + $0x150] sm:$0xff] %v880
                %v882 = vld [vmem:[%s836 + $0xb0] sm:$0xff]
                %883 = vst [vmem:[%s837 + $0x158] sm:$0xff] %v882
                %v884 = vld [vmem:[%s836 + $0xb8] sm:$0xff]
                %885 = vst [vmem:[%s837 + $0x160] sm:$0xff] %v884
                %v886 = vld [vmem:[%s836 + $0xc0] sm:$0xff]
                %887 = vst [vmem:[%s837 + $0x180] sm:$0xff] %v886
                %v888 = vld [vmem:[%s836 + $0xc8] sm:$0xff]
                %889 = vst [vmem:[%s837 + $0x188] sm:$0xff] %v888
                %v890 = vld [vmem:[%s836 + $0xd0] sm:$0xff]
                %891 = vst [vmem:[%s837 + $0x190] sm:$0xff] %v890
                %v892 = vld [vmem:[%s836 + $0xd8] sm:$0xff]
                %893 = vst [vmem:[%s837 + $0x1b0] sm:$0xff] %v892
                %v894 = vld [vmem:[%s836 + $0xe0] sm:$0xff]
                %895 = vst [vmem:[%s837 + $0x1b8] sm:$0xff] %v894
                %v896 = vld [vmem:[%s836 + $0xe8] sm:$0xff]
                %897 = vst [vmem:[%s837 + $0x1c0] sm:$0xff] %v896
                %v898 = vld [vmem:[%s836 + $0xf0] sm:$0xff]
                %899 = vst [vmem:[%s837 + $0x1e0] sm:$0xff] %v898
                %v900 = vld [vmem:[%s836 + $0xf8] sm:$0xff]
                %901 = vst [vmem:[%s837 + $0x1e8] sm:$0xff] %v900
                %v902 = vld [vmem:[%s836 + $0x100] sm:$0xff]
                %903 = vst [vmem:[%s837 + $0x1f0] sm:$0xff] %v902
                %v904 = vld [vmem:[%s836 + $0x108] sm:$0xff]
                %905 = vst [vmem:[%s837 + $0x210] sm:$0xff] %v904
                %v906 = vld [vmem:[%s836 + $0x110] sm:$0xff]
                %907 = vst [vmem:[%s837 + $0x218] sm:$0xff] %v906
                %v908 = vld [vmem:[%s836 + $0x118] sm:$0xff]
                %909 = vst [vmem:[%s837 + $0x220] sm:$0xff] %v908
                %v910 = vld [vmem:[%s836 + $0x120] sm:$0xff]
                %911 = vst [vmem:[%s837 + $0x240] sm:$0xff] %v910
                %v912 = vld [vmem:[%s836 + $0x128] sm:$0xff]
                %913 = vst [vmem:[%s837 + $0x248] sm:$0xff] %v912
                %v914 = vld [vmem:[%s836 + $0x130] sm:$0xff]
                %915 = vst [vmem:[%s837 + $0x250] sm:$0xff] %v914
                %v916 = vld [vmem:[%s836 + $0x138] sm:$0xff]
                %917 = vst [vmem:[%s837 + $0x270] sm:$0xff] %v916
                %v918 = vld [vmem:[%s836 + $0x140] sm:$0xff]
                %919 = vst [vmem:[%s837 + $0x278] sm:$0xff] %v918
                %v920 = vld [vmem:[%s836 + $0x148] sm:$0xff]
                %921 = vst [vmem:[%s837 + $0x280] sm:$0xff] %v920
                %v922 = vld [vmem:[%s836 + $0x150] sm:$0xff]
                %923 = vst [vmem:[%s837 + $0x2a0] sm:$0xff] %v922
                %v924 = vld [vmem:[%s836 + $0x158] sm:$0xff]
                %925 = vst [vmem:[%s837 + $0x2a8] sm:$0xff] %v924
                %v926 = vld [vmem:[%s836 + $0x160] sm:$0xff]
                %927 = vst [vmem:[%s837 + $0x2b0] sm:$0xff] %v926
                %v928 = vld [vmem:[%s836 + $0x168] sm:$0xff]
                %929 = vst [vmem:[%s837 + $0x2d0] sm:$0xff] %v928
                %v930 = vld [vmem:[%s836 + $0x170] sm:$0xff]
                %931 = vst [vmem:[%s837 + $0x2d8] sm:$0xff] %v930
                %v932 = vld [vmem:[%s836 + $0x178] sm:$0xff]
                %933 = vst [vmem:[%s837 + $0x2e0] sm:$0xff] %v932
              $region72: #{tpu_custom_call.1} parent=66 // loop_footer
                %s835 = sadd.s32 1, %s831
              $region73: #{tpu_custom_call.1} parent=66 // loop_footer_branch
                %830 = sbr.rel target = $region69
              $region74: #{tpu_custom_call.1} parent=66 // loop_exit
                _
            $region67: #{tpu_custom_call.1} parent=62 // pred_fallthru
              _
            // Predicated region
            $region75: #{tpu_custom_call.1} parent=62 // pred_check
              _
            $region76: #{tpu_custom_call.1} parent=62 // pred_check_branch
              %935 = sbr.rel target = $region78
            $region77: #{tpu_custom_call.1} parent=62 // pred_region
              _
            $region78: #{tpu_custom_call.1} parent=62 // pred_fallthru
              _
          $region63: #{tpu_custom_call.1} parent=58 // pred_fallthru
            _
          %936 = vnop
        $region59: #{tpu_custom_call.1} parent=50 // pred_fallthru
          _
      $region51: #{tpu_custom_call.1} parent=5 // pred_fallthru
        _
      %p937 = scmp.le.s32.totalorder 2, %s9
      // Predicated region
      $region79: #{tpu_custom_call.1} parent=5 // pred_check
        %p938 = pneg %p937
      $region80: #{tpu_custom_call.1} parent=5 // pred_check_branch
        %940 = sbr.rel (%p938) target = $region82
      $region81: #{tpu_custom_call.1} parent=5 // pred_region
        %s941 = ssub.s32 %s9, 2
        // Predicated region
        $region83: #{tpu_custom_call.1} parent=81 // pred_check
          %p942 = pneg %p122
        $region84: #{tpu_custom_call.1} parent=81 // pred_check_branch
          %944 = sbr.rel (%p942) target = $region86
        $region85: #{tpu_custom_call.1} parent=81 // pred_region
          %s945 = sand.u32 %s107, 1
          %s946 = sand.u32 %s107, 1
          %s947 = smul.addr %s946, 384
          %s948 = scalar_lea.vmem [#allocation3], %s947
        $region86: #{tpu_custom_call.1} parent=81 // pred_fallthru
          _
      $region82: #{tpu_custom_call.1} parent=5 // pred_fallthru
        _
    $region6: #{tpu_custom_call.1} parent=1 // loop_footer
      %s13 = sadd.s32 1, %s9
    $region7: #{tpu_custom_call.1} parent=1 // loop_footer_branch
      %8 = sbr.rel target = $region3
    $region8: #{tpu_custom_call.1} parent=1 // loop_exit
      _

</llo_original>
